<compile_context>
chip_gen: v6e
topology: v6e:2x2x1
jax: 0.10.0
libtpu: 0.0.40
codegen_flags: <defaults>
</compile_context>

<pallas_src>
import functools

import jax
import jax.numpy as jnp
from jax.experimental import pallas as pl
from jax.experimental.pallas import tpu as pltpu

EPS = 1e-5  # PyTorch BatchNorm1d default


def stats_matmul_kernel(x_ref, w_ref, gb_ref, h_ref, ss_ref, sum_ref, sq_ref,
                        *, n_rows):
    """Pass 1: h = x @ W per batch tile; accumulate global batch statistics.

    x_ref:   (TILE_N, D_in)
    w_ref:   (D_in, D_out)   -- transposed PyTorch Linear weight (bias dropped:
                                it cancels exactly under training-mode BN)
    gb_ref:  (2, D_out)      -- row 0 = gamma, row 1 = beta
    h_ref:   (TILE_N, D_out) -- pre-BN activations, re-read by pass 2
    ss_ref:  (2, D_out)      -- row 0 = a = gamma*inv_std, row 1 = c = beta-mean*a
    sum_ref, sq_ref: (1, D_out) f32 VMEM accumulators (persist across grid steps)
    """
    i = pl.program_id(0)

    @pl.when(i == 0)
    def _init():
        sum_ref[...] = jnp.zeros_like(sum_ref)
        sq_ref[...] = jnp.zeros_like(sq_ref)

    # MXU matmul with f32 accumulation (keep f32 inputs so BN stats match the
    # PyTorch reference; cast to bf16 here if model tolerance allows).
    h = jnp.dot(x_ref[...], w_ref[...], preferred_element_type=jnp.float32)
    h_ref[...] = h

    sum_ref[...] += jnp.sum(h, axis=0, keepdims=True)
    sq_ref[...] += jnp.sum(h * h, axis=0, keepdims=True)

    @pl.when(i == pl.num_programs(0) - 1)
    def _finalize():
        inv_n = 1.0 / n_rows
        mean = sum_ref[...] * inv_n
        var = sq_ref[...] * inv_n - mean * mean          # biased variance
        inv_std = jax.lax.rsqrt(var + EPS)               # EUP slot
        gb = gb_ref[...]
        a = gb[0:1, :] * inv_std                         # gamma * inv_std
        c = gb[1:2, :] - mean * a                        # beta - mean * a
        ss_ref[...] = jnp.concatenate([a, c], axis=0)


def normalize_relu_kernel(h_ref, ss_ref, o_ref):
    """Pass 2: fused single-FMA normalize + ReLU (batch tiles are independent)."""
    ss = ss_ref[...]
    a = ss[0:1, :]
    c = ss[1:2, :]
    o_ref[...] = jnp.maximum(h_ref[...] * a + c, 0.0).astype(o_ref.dtype)


def mlp_block_forward(x, w_t, gamma, beta, *, tile_n=128):
    """x: (N, D_in) f32; w_t: (D_in, D_out); gamma/beta: (D_out,)."""
    n, d_in = x.shape
    d_out = w_t.shape[1]
    assert n % tile_n == 0, "batch must be a multiple of tile_n"
    num_tiles = n // tile_n

    gb = jnp.stack([gamma, beta], axis=0)  # (2, D_out): one packed param input

    # Modest explicit VMEM budget: safe on v5e/v6e (128 MiB) and v7x (64 MiB).
    cparams_reduce = pltpu.CompilerParams(
        dimension_semantics=("arbitrary",),          # cross-tile stats reduction
        vmem_limit_bytes=32 * 1024 * 1024,
    )
    cparams_parallel = pltpu.CompilerParams(
        dimension_semantics=("parallel",),           # shard across TCs (v7x)
        vmem_limit_bytes=32 * 1024 * 1024,
    )

    # Pass 1: tiled matmul + global batch statistics (+ fused scale/shift).
    h, scale_shift = pl.pallas_call(
        functools.partial(stats_matmul_kernel, n_rows=float(n)),
        out_shape=(
            jax.ShapeDtypeStruct((n, d_out), jnp.float32),
            jax.ShapeDtypeStruct((2, d_out), jnp.float32),
        ),
        grid_spec=pltpu.PrefetchScalarGridSpec(
            num_scalar_prefetch=0,
            grid=(num_tiles,),
            in_specs=[
                pl.BlockSpec((tile_n, d_in), lambda i: (i, 0)),
                pl.BlockSpec((d_in, d_out), lambda i: (0, 0)),
                pl.BlockSpec((2, d_out), lambda i: (0, 0)),
            ],
            out_specs=[
                pl.BlockSpec((tile_n, d_out), lambda i: (i, 0)),
                pl.BlockSpec((2, d_out), lambda i: (0, 0)),   # resident accumulator
            ],
            scratch_shapes=[
                pltpu.VMEM((1, d_out), jnp.float32),  # sum
                pltpu.VMEM((1, d_out), jnp.float32),  # sum of squares
            ],
        ),
        compiler_params=cparams_reduce,
    )(x, w_t, gb)

    # Pass 2: fused normalize + ReLU, lane-dense (D_out multiple of 128) output.
    out = pl.pallas_call(
        normalize_relu_kernel,
        out_shape=jax.ShapeDtypeStruct((n, d_out), jnp.float32),
        grid_spec=pltpu.PrefetchScalarGridSpec(
            num_scalar_prefetch=0,
            grid=(num_tiles,),
            in_specs=[
                pl.BlockSpec((tile_n, d_out), lambda i: (i, 0)),
                pl.BlockSpec((2, d_out), lambda i: (0, 0)),
            ],
            out_specs=pl.BlockSpec((tile_n, d_out), lambda i: (i, 0)),
        ),
        compiler_params=cparams_parallel,
    )(h, scale_shift)

    return out


if __name__ == "__main__":
    # Shapes consistent with the module's MLP_block(input_dim, output_dim)
    # forward on a (batch, input_dim) activation; batch sized for MXU occupancy
    # and to exercise the multi-tile stats reduction (2 tiles of 128 rows).
    batch, input_dim, output_dim = 256, 64, 128
    tile_n = 128

    key = jax.random.PRNGKey(0)
    kx, kw, kb = jax.random.split(key, 3)

    x = jax.random.normal(kx, (batch, input_dim), dtype=jnp.float32)

    # Deterministic parameter init (shapes from nn.Linear / nn.BatchNorm1d).
    bound = 1.0 / (input_dim ** 0.5)
    w = jax.random.uniform(kw, (output_dim, input_dim), jnp.float32, -bound, bound)
    b = jax.random.uniform(kb, (output_dim,), jnp.float32, -bound, bound)
    gamma = jnp.ones((output_dim,), jnp.float32)   # BatchNorm1d weight default
    beta = jnp.zeros((output_dim,), jnp.float32)   # BatchNorm1d bias default

    w_t = w.T  # (input_dim, output_dim) so the kernel does plain x @ W

    out = mlp_block_forward(x, w_t, gamma, beta, tile_n=tile_n)
    jax.block_until_ready(out)

    # Pure-JAX reference WITH the Linear bias (kernel drops it: under
    # training-mode BatchNorm the mean subtraction cancels it exactly).
    h_ref = x @ w_t + b
    m = h_ref.mean(axis=0, keepdims=True)
    v = ((h_ref - m) ** 2).mean(axis=0, keepdims=True)
    ref = jnp.maximum((h_ref - m) / jnp.sqrt(v + EPS) * gamma + beta, 0.0)
    assert jnp.allclose(out, ref, atol=2e-4, rtol=2e-4), "mismatch vs reference"

    print("KERNEL_OK")
</pallas_src>

<mosaic_0001>
module attributes {stable_mosaic.version = 11 : i64} {
  func.func @stats_matmul_kernel(%arg0: i32, %arg1: memref<128x64xf32, #tpu.memory_space<vmem>>, %arg2: memref<64x128xf32, #tpu.memory_space<vmem>>, %arg3: memref<2x128xf32, #tpu.memory_space<vmem>>, %arg4: memref<128x128xf32, #tpu.memory_space<vmem>>, %arg5: memref<2x128xf32, #tpu.memory_space<vmem>>, %arg6: memref<1x128xf32, #tpu.memory_space<vmem>>, %arg7: memref<1x128xf32, #tpu.memory_space<vmem>>) attributes {dimension_semantics = [#tpu.dimension_semantics<arbitrary>], iteration_bounds = array<i64: 2>, scalar_prefetch = 0 : i64, scratch_operands = 2 : i64, tpu.core_type = #tpu.core_type<tc>, window_params = [{transform_indices = @transform_0, window_bounds = array<i64: 128, 64>}, {pipeline_mode = #tpu.pipeline_mode<synchronous>, transform_indices = @transform_1, window_bounds = array<i64: 64, 128>}, {pipeline_mode = #tpu.pipeline_mode<synchronous>, transform_indices = @transform_2, window_bounds = array<i64: 2, 128>}, {transform_indices = @transform_3, window_bounds = array<i64: 128, 128>}, {pipeline_mode = #tpu.pipeline_mode<synchronous>, transform_indices = @transform_4, window_bounds = array<i64: 2, 128>}]} {
    %c0_i32 = arith.constant 0 : i32
    %0 = arith.cmpi eq, %arg0, %c0_i32 : i32
    %1 = arith.extui %0 : i1 to i32
    %c0_i32_0 = arith.constant 0 : i32
    %2 = arith.cmpi ne, %1, %c0_i32_0 : i32
    scf.if %2 {
      %cst_17 = arith.constant 0.000000e+00 : f32
      %21 = vector.broadcast %cst_17 : f32 to vector<1x128xf32>
      %c0_18 = arith.constant 0 : index
      %c0_19 = arith.constant 0 : index
      %22 = vector.load %arg6[%c0_18, %c0_19] : memref<1x128xf32, #tpu.memory_space<vmem>>, vector<1x128xf32>
      tpu.vector_store %arg6[%c0_18, %c0_19], %21 {strides = array<i32>} : memref<1x128xf32, #tpu.memory_space<vmem>>, vector<1x128xf32>,
      %cst_20 = arith.constant 0.000000e+00 : f32
      %23 = vector.broadcast %cst_20 : f32 to vector<1x128xf32>
      %c0_21 = arith.constant 0 : index
      %c0_22 = arith.constant 0 : index
      %24 = vector.load %arg7[%c0_21, %c0_22] : memref<1x128xf32, #tpu.memory_space<vmem>>, vector<1x128xf32>
      tpu.vector_store %arg7[%c0_21, %c0_22], %23 {strides = array<i32>} : memref<1x128xf32, #tpu.memory_space<vmem>>, vector<1x128xf32>,
    } else {
    }
    %c0 = arith.constant 0 : index
    %c0_1 = arith.constant 0 : index
    %3 = vector.load %arg1[%c0, %c0_1] : memref<128x64xf32, #tpu.memory_space<vmem>>, vector<128x64xf32>
    %c0_2 = arith.constant 0 : index
    %c0_3 = arith.constant 0 : index
    %4 = vector.load %arg2[%c0_2, %c0_3] : memref<64x128xf32, #tpu.memory_space<vmem>>, vector<64x128xf32>
    %cst = arith.constant dense<0.000000e+00> : vector<128x128xf32>
    %5 = tpu.matmul %3, %4, %cst {dimension_numbers = #tpu.dot_dimension_numbers<[1], [0], [0], [1], [0, 0, 1, 1], [], []>} : vector<128x64xf32>, vector<64x128xf32>, vector<128x128xf32> -> vector<128x128xf32>
    %c0_4 = arith.constant 0 : index
    %c0_5 = arith.constant 0 : index
    %6 = vector.load %arg4[%c0_4, %c0_5] : memref<128x128xf32, #tpu.memory_space<vmem>>, vector<128x128xf32>
    tpu.vector_store %arg4[%c0_4, %c0_5], %5 {strides = array<i32>} : memref<128x128xf32, #tpu.memory_space<vmem>>, vector<128x128xf32>,
    %c0_6 = arith.constant 0 : index
    %c0_7 = arith.constant 0 : index
    %7 = vector.load %arg6[%c0_6, %c0_7] : memref<1x128xf32, #tpu.memory_space<vmem>>, vector<1x128xf32>
    %cst_8 = arith.constant dense<0.000000e+00> : vector<128xf32>
    %8 = vector.multi_reduction <add>, %5, %cst_8 [0] : vector<128x128xf32> to vector<128xf32>
    %9 = vector.shape_cast %8 : vector<128xf32> to vector<1x128xf32>
    %10 = arith.addf %7, %9 : vector<1x128xf32>
    %c0_9 = arith.constant 0 : index
    %c0_10 = arith.constant 0 : index
    %11 = vector.load %arg6[%c0_9, %c0_10] : memref<1x128xf32, #tpu.memory_space<vmem>>, vector<1x128xf32>
    tpu.vector_store %arg6[%c0_9, %c0_10], %10 {strides = array<i32>} : memref<1x128xf32, #tpu.memory_space<vmem>>, vector<1x128xf32>,
    %c0_11 = arith.constant 0 : index
    %c0_12 = arith.constant 0 : index
    %12 = vector.load %arg7[%c0_11, %c0_12] : memref<1x128xf32, #tpu.memory_space<vmem>>, vector<1x128xf32>
    %13 = arith.mulf %5, %5 : vector<128x128xf32>
    %cst_13 = arith.constant dense<0.000000e+00> : vector<128xf32>
    %14 = vector.multi_reduction <add>, %13, %cst_13 [0] : vector<128x128xf32> to vector<128xf32>
    %15 = vector.shape_cast %14 : vector<128xf32> to vector<1x128xf32>
    %16 = arith.addf %12, %15 : vector<1x128xf32>
    %c0_14 = arith.constant 0 : index
    %c0_15 = arith.constant 0 : index
    %17 = vector.load %arg7[%c0_14, %c0_15] : memref<1x128xf32, #tpu.memory_space<vmem>>, vector<1x128xf32>
    tpu.vector_store %arg7[%c0_14, %c0_15], %16 {strides = array<i32>} : memref<1x128xf32, #tpu.memory_space<vmem>>, vector<1x128xf32>,
    %c1_i32 = arith.constant 1 : i32
    %18 = arith.cmpi eq, %arg0, %c1_i32 : i32
    %19 = arith.extui %18 : i1 to i32
    %c0_i32_16 = arith.constant 0 : i32
    %20 = arith.cmpi ne, %19, %c0_i32_16 : i32
    scf.if %20 {
      %c0_17 = arith.constant 0 : index
      %c0_18 = arith.constant 0 : index
      %21 = vector.load %arg6[%c0_17, %c0_18] : memref<1x128xf32, #tpu.memory_space<vmem>>, vector<1x128xf32>
      %cst_19 = arith.constant 3.906250e-03 : f32
      %22 = vector.broadcast %cst_19 : f32 to vector<1x128xf32>
      %23 = arith.mulf %21, %22 : vector<1x128xf32>
      %c0_20 = arith.constant 0 : index
      %c0_21 = arith.constant 0 : index
      %24 = vector.load %arg7[%c0_20, %c0_21] : memref<1x128xf32, #tpu.memory_space<vmem>>, vector<1x128xf32>
      %cst_22 = arith.constant 3.906250e-03 : f32
      %25 = vector.broadcast %cst_22 : f32 to vector<1x128xf32>
      %26 = arith.mulf %24, %25 : vector<1x128xf32>
      %27 = arith.mulf %23, %23 : vector<1x128xf32>
      %28 = arith.subf %26, %27 : vector<1x128xf32>
      %cst_23 = arith.constant 9.99999974E-6 : f32
      %29 = vector.broadcast %cst_23 : f32 to vector<1x128xf32>
      %30 = arith.addf %28, %29 : vector<1x128xf32>
      %31 = math.rsqrt %30 : vector<1x128xf32>
      %c0_24 = arith.constant 0 : index
      %c0_25 = arith.constant 0 : index
      %32 = vector.load %arg3[%c0_24, %c0_25] : memref<2x128xf32, #tpu.memory_space<vmem>>, vector<2x128xf32>
      %33 = vector.extract_strided_slice %32 {offsets = [0, 0], sizes = [1, 128], strides = [1, 1]} : vector<2x128xf32> to vector<1x128xf32>
      %34 = arith.mulf %33, %31 : vector<1x128xf32>
      %35 = vector.extract_strided_slice %32 {offsets = [1, 0], sizes = [1, 128], strides = [1, 1]} : vector<2x128xf32> to vector<1x128xf32>
      %36 = arith.mulf %23, %34 : vector<1x128xf32>
      %37 = arith.subf %35, %36 : vector<1x128xf32>
      %38 = tpu.concatenate %34, %37 in 0 : vector<1x128xf32>, vector<1x128xf32> -> vector<2x128xf32>
      %c0_26 = arith.constant 0 : index
      %c0_27 = arith.constant 0 : index
      %39 = vector.load %arg5[%c0_26, %c0_27] : memref<2x128xf32, #tpu.memory_space<vmem>>, vector<2x128xf32>
      tpu.vector_store %arg5[%c0_26, %c0_27], %38 {strides = array<i32>} : memref<2x128xf32, #tpu.memory_space<vmem>>, vector<2x128xf32>,
    } else {
    }
    return
  }
  func.func @transform_0(%arg0: i32) -> (i32, i32) {
    %c0_i32 = arith.constant 0 : i32
    %c0_i32_0 = arith.constant 0 : i32
    return %arg0, %c0_i32 : i32, i32
  }
  func.func @transform_1(%arg0: i32) -> (i32, i32) {
    %c0_i32 = arith.constant 0 : i32
    %c0_i32_0 = arith.constant 0 : i32
    %c0_i32_1 = arith.constant 0 : i32
    return %c0_i32, %c0_i32_0 : i32, i32
  }
  func.func @transform_2(%arg0: i32) -> (i32, i32) {
    %c0_i32 = arith.constant 0 : i32
    %c0_i32_0 = arith.constant 0 : i32
    %c0_i32_1 = arith.constant 0 : i32
    return %c0_i32, %c0_i32_0 : i32, i32
  }
  func.func @transform_3(%arg0: i32) -> (i32, i32) {
    %c0_i32 = arith.constant 0 : i32
    %c0_i32_0 = arith.constant 0 : i32
    return %arg0, %c0_i32 : i32, i32
  }
  func.func @transform_4(%arg0: i32) -> (i32, i32) {
    %c0_i32 = arith.constant 0 : i32
    %c0_i32_0 = arith.constant 0 : i32
    %c0_i32_1 = arith.constant 0 : i32
    return %c0_i32, %c0_i32_0 : i32, i32
  }
}

</mosaic_0001>

<llo_original>
// kernel: tpu_custom_call.1
$region0: #{tpu_custom_call.1}
  #allocation0 [shape = 'u32[]', space=smem, size = 0x4, offset = 0x4, fixed_abs, tag = 'smem constant byte address 0x4 - core index']
  #allocation1 [shape = 'u32[144,128]{1,0:T(1,128)}', space=vmem, size = 0x12000, scoped, tag = 'internal scratch']
  #allocation2 [shape = 'f32[1,128]{1,0:T(1,128)}', space=vmem, size = 0x200, scoped, tag = 'scratch operand']
  #allocation3 [shape = 'f32[1,128]{1,0:T(1,128)}', space=vmem, size = 0x200, scoped, tag = 'scratch operand']
  %s0 = inlined_call_operand.vmem [shape: f32[256,64], index: 0, kind: input, shape index: {}]
  %s1 = inlined_call_operand.vmem [shape: f32[64,128], index: 1, kind: input, shape index: {}]
  %s2 = inlined_call_operand.vmem [shape: f32[2,128], index: 2, kind: input, shape index: {}]
  %s3 = inlined_call_operand.hbm [shape: f32[256,128], index: 3, kind: output, shape index: {0}]
  %s4 = inlined_call_operand.hbm [shape: f32[2,128], index: 4, kind: output, shape index: {1}]
  %5 = xla_tuple %s3, %s4
  %s6 = sld [smem:[#allocation0]]
  $region61: #{tpu_custom_call.1} parent=0
    _
  %s8 = ssub.s32 1, %s6
  %s9 = scalar_select 0, %s8, %s6
  $region1: #{tpu_custom_call.1} parent=0
    #allocation4 [shape = 'u8[131072]{0}', space=vmem, size = 0x20000, scoped, tag = 'output window, operand 0']
    #allocation5 [shape = 's32[2]{0}', space=sflag, size = 0x8, scoped, tag = 'scoped memory for tpu_custom_call.1']
    #allocation6 [shape = 'u8[1024]{0}', space=vmem, size = 0x400, scoped, tag = 'output window, operand 1, single buffered']
    #allocation7 [shape = 's32[1]{0}', space=sflag, size = 0x4, scoped, tag = 'scoped memory for tpu_custom_call.1']
    %10 = vsyncpa [#allocation5], 0
    %s11 = scalar_lea.sflag [#allocation5], 1
    %12 = vsyncpa %s11, 0
    %13 = vsyncpa [#allocation7], 0
    loop: start=0, step=1, limit=4
    $region2: #{tpu_custom_call.1} parent=1 // loop_pre_header
      _
    $region3: #{tpu_custom_call.1} parent=1 // loop_header
      %s15 = sphi 0, %s19
      %p16 = scmp.ge.s32.totalorder %s15, 4
      %s25 = sphi 0, %s27
      %s28 = sphi 0, %s25
      %s29 = sphi 0, %s28
      %s45 = sphi 0, %s29
      %s49 = sphi 0, %s49
      %s51 = sphi 0, %s49
      %s52 = sphi 0, %s51
      %s66 = sphi 0, %s52
      %s70 = sphi 0, %s70
      %s72 = sphi 0, %s70
      %s73 = sphi 0, %s72
      %s87 = sphi 0, %s73
      %s93 = sphi 0, %s95
      %s96 = sphi 0, %s93
      %s97 = sphi 0, %s96
      %s113 = sphi 0, %s97
      %s117 = sphi 0, %s117
      %s119 = sphi 0, %s117
      %s120 = sphi 0, %s119
      %s134 = sphi 0, %s120
    $region4: #{tpu_custom_call.1} parent=1 // loop_header_branch
      %18 = sbr.rel (%p16) target = $region8
    $region5: #{tpu_custom_call.1} parent=1 // loop_body
      %s20 = ssub.s32 %s15, 1
      %s21 = ssub.s32 %s15, 2
      %s22 = sadd.s32 %s15, 1
      %s23 = ssub.s32 %s15, %s22
      %p24 = scmp.eq.s32.totalorder %s23, 0
      %s26 = sadd.s32 %s25, 1
      %s27 = scalar_select %p24, %s25, %s26
      %p30 = pneg %p24
      %p31 = scmp.eq.s32.totalorder %s15, 1
      %p32 = por %p30, %p31
      %p33 = scmp.ne.s32.totalorder %s25, %s28
      %p34 = scmp.eq.s32.totalorder %s15, 0
      %p35 = por %p33, %p34
      %p36 = scmp.ne.s32.totalorder %s25, %s28
      %p37 = scmp.eq.s32.totalorder %s20, 1
      %p38 = por %p36, %p37
      %p39 = scmp.ne.s32.totalorder %s28, %s29
      %p40 = scmp.eq.s32.totalorder %s20, 0
      %p41 = por %p39, %p40
      %p42 = scmp.ne.s32.totalorder %s28, %s29
      %p43 = scmp.eq.s32.totalorder %s21, 1
      %p44 = por %p42, %p43
      %p46 = scmp.ne.s32.totalorder %s29, %s45
      %p47 = scmp.eq.s32.totalorder %s21, 0
      %p48 = por %p46, %p47
      %s50 = sadd.s32 %s49, 1
      %p53 = scmp.eq.s32.totalorder %s15, 1
      %p54 = scmp.ne.s32.totalorder %s49, %s51
      %p55 = scmp.eq.s32.totalorder %s15, 0
      %p56 = por %p54, %p55
      %p57 = scmp.ne.s32.totalorder %s49, %s51
      %p58 = scmp.eq.s32.totalorder %s20, 1
      %p59 = por %p57, %p58
      %p60 = scmp.ne.s32.totalorder %s51, %s52
      %p61 = scmp.eq.s32.totalorder %s20, 0
      %p62 = por %p60, %p61
      %p63 = scmp.ne.s32.totalorder %s51, %s52
      %p64 = scmp.eq.s32.totalorder %s21, 1
      %p65 = por %p63, %p64
      %p67 = scmp.ne.s32.totalorder %s52, %s66
      %p68 = scmp.eq.s32.totalorder %s21, 0
      %p69 = por %p67, %p68
      %s71 = sadd.s32 %s70, 1
      %p74 = scmp.eq.s32.totalorder %s15, 1
      %p75 = scmp.ne.s32.totalorder %s70, %s72
      %p76 = scmp.eq.s32.totalorder %s15, 0
      %p77 = por %p75, %p76
      %p78 = scmp.ne.s32.totalorder %s70, %s72
      %p79 = scmp.eq.s32.totalorder %s20, 1
      %p80 = por %p78, %p79
      %p81 = scmp.ne.s32.totalorder %s72, %s73
      %p82 = scmp.eq.s32.totalorder %s20, 0
      %p83 = por %p81, %p82
      %p84 = scmp.ne.s32.totalorder %s72, %s73
      %p85 = scmp.eq.s32.totalorder %s21, 1
      %p86 = por %p84, %p85
      %p88 = scmp.ne.s32.totalorder %s73, %s87
      %p89 = scmp.eq.s32.totalorder %s21, 0
      %p90 = por %p88, %p89
      %s91 = ssub.s32 %s15, %s22
      %p92 = scmp.eq.s32.totalorder %s91, 0
      %s94 = sadd.s32 %s93, 1
      %s95 = scalar_select %p92, %s93, %s94
      %p98 = pneg %p92
      %p99 = scmp.eq.s32.totalorder %s15, 1
      %p100 = por %p98, %p99
      %p101 = scmp.ne.s32.totalorder %s93, %s96
      %p102 = scmp.eq.s32.totalorder %s15, 0
      %p103 = por %p101, %p102
      %p104 = scmp.ne.s32.totalorder %s93, %s96
      %p105 = scmp.eq.s32.totalorder %s20, 1
      %p106 = por %p104, %p105
      %p107 = scmp.ne.s32.totalorder %s96, %s97
      %p108 = scmp.eq.s32.totalorder %s20, 0
      %p109 = por %p107, %p108
      %p110 = scmp.ne.s32.totalorder %s96, %s97
      %p111 = scmp.eq.s32.totalorder %s21, 1
      %p112 = por %p110, %p111
      %p114 = scmp.ne.s32.totalorder %s97, %s113
      %p115 = scmp.eq.s32.totalorder %s21, 0
      %p116 = por %p114, %p115
      %s118 = sadd.s32 %s117, 1
      %p121 = scmp.eq.s32.totalorder %s15, 1
      %p122 = scmp.ne.s32.totalorder %s117, %s119
      %p123 = scmp.eq.s32.totalorder %s15, 0
      %p124 = por %p122, %p123
      %p125 = scmp.ne.s32.totalorder %s117, %s119
      %p126 = scmp.eq.s32.totalorder %s20, 1
      %p127 = por %p125, %p126
      %p128 = scmp.ne.s32.totalorder %s119, %s120
      %p129 = scmp.eq.s32.totalorder %s20, 0
      %p130 = por %p128, %p129
      %p131 = scmp.ne.s32.totalorder %s119, %s120
      %p132 = scmp.eq.s32.totalorder %s21, 1
      %p133 = por %p131, %p132
      %p135 = scmp.ne.s32.totalorder %s120, %s134
      %p136 = scmp.eq.s32.totalorder %s21, 0
      %p137 = por %p135, %p136
      %p138 = scmp.le.s32.totalorder 1, %s15
      %p139 = scmp.lt.s32.totalorder %s15, 3
      %p140 = pnand %p138, %p139
      %p141 = pneg %p140
      // Predicated region
      $region9: #{tpu_custom_call.1} parent=5 // pred_check
        _
      $region10: #{tpu_custom_call.1} parent=5 // pred_check_branch
        %143 = sbr.rel (%p140) target = $region12
      $region11: #{tpu_custom_call.1} parent=5 // pred_region
        %s144 = ssub.s32 %s15, 1
        // Predicated region
        $region13: #{tpu_custom_call.1} parent=11 // pred_check
          %p145 = pneg %p62
        $region14: #{tpu_custom_call.1} parent=11 // pred_check_branch
          %147 = sbr.rel (%p145) target = $region16
        $region15: #{tpu_custom_call.1} parent=11 // pred_region
          _
        $region16: #{tpu_custom_call.1} parent=11 // pred_fallthru
          _
        // Predicated region
        $region17: #{tpu_custom_call.1} parent=11 // pred_check
          %p148 = pneg %p83
        $region18: #{tpu_custom_call.1} parent=11 // pred_check_branch
          %150 = sbr.rel (%p148) target = $region20
        $region19: #{tpu_custom_call.1} parent=11 // pred_region
          _
        $region20: #{tpu_custom_call.1} parent=11 // pred_fallthru
          _
      $region12: #{tpu_custom_call.1} parent=5 // pred_fallthru
        _
      %p151 = scmp.lt.s32.totalorder %s15, 2
      // Predicated region
      $region21: #{tpu_custom_call.1} parent=5 // pred_check
        %p152 = pneg %p151
      $region22: #{tpu_custom_call.1} parent=5 // pred_check_branch
        %154 = sbr.rel (%p152) target = $region24
      $region23: #{tpu_custom_call.1} parent=5 // pred_region
        // Predicated region
        $region25: #{tpu_custom_call.1} parent=23 // pred_check
          %p155 = pneg %p35
        $region26: #{tpu_custom_call.1} parent=23 // pred_check_branch
          %157 = sbr.rel (%p155) target = $region28
        $region27: #{tpu_custom_call.1} parent=23 // pred_region
          %s158 = smul.u32 16, %s15
          %p159 = scmp.lt.s32.totalorder %s158, 31
          %s160 = scalar_select %p159, %s158, 31
          %s161 = smul.addr %s160, 8
          %s162 = scalar_lea.vmem %s0, %s161
          %s163 = smul.u32 16, %s15
        $region28: #{tpu_custom_call.1} parent=23 // pred_fallthru
          _
      $region24: #{tpu_custom_call.1} parent=5 // pred_fallthru
        _
      %p164 = scmp.le.s32.totalorder 1, %s15
      %p165 = scmp.lt.s32.totalorder %s15, 3
      %p166 = pnand %p164, %p165
      %p167 = pneg %p166
      // Predicated region
      $region29: #{tpu_custom_call.1} parent=5 // pred_check
        _
      $region30: #{tpu_custom_call.1} parent=5 // pred_check_branch
        %169 = sbr.rel (%p166) target = $region32
      $region31: #{tpu_custom_call.1} parent=5 // pred_region
        %s170 = ssub.s32 %s15, 1
        %s171 = smul.u32 16, %s20
        %p172 = scmp.lt.s32.totalorder %s171, 31
        %s173 = scalar_select %p172, %s171, 31
        %s174 = smul.addr %s173, 8
        %s175 = scalar_lea.vmem %s0, %s174
        %p176 = pneg %p41
        %p177 = pneg %p38
        %p178 = pneg %p62
        %p179 = pneg %p59
        %p180 = pneg %p83
        %p181 = pneg %p80
        %p182 = pneg %p109
        %p183 = pneg %p106
        %s184 = sand.u32 %s96, 1
        %s185 = scalar_lea.sflag [#allocation5], %s184
        %s186 = sand.u32 %s96, 1
        %s187 = smul.addr %s186, 128
        %s188 = scalar_lea.vmem [#allocation4], %s187
        %p189 = pneg %p130
        %p190 = pneg %p127
        %s191 = smul.u32 16, %s20
        %p192 = scmp.lt.s32.totalorder %s191, 31
        %s193 = scalar_select %p192, %s191, 31
        %s194 = smul.addr %s193, 8
        %s195 = scalar_lea.vmem %s0, %s194
        %s196 = smul.u32 16, %s20
        %s197 = smul.u32 16, %s20
        %p198 = scmp.eq.s32.totalorder %s20, 0
        // Predicated region
        $region33: #{tpu_custom_call.1} parent=31 // pred_check
          %p199 = pneg %p198
        $region34: #{tpu_custom_call.1} parent=31 // pred_check_branch
          %201 = sbr.rel (%p199) target = $region36
        $region35: #{tpu_custom_call.1} parent=31 // pred_region
          %202 = vst [vmem:[#allocation2] sm:$0x1] 0.0
          %203 = vst [vmem:[#allocation3] sm:$0x1] 0.0
        $region36: #{tpu_custom_call.1} parent=31 // pred_fallthru
          _
        %v204 = vld [vmem:[%s195] sm:$0xff]
        %v205 = vld [vmem:[%s195 + $0x8] sm:$0xff]
        %v206 = vld [vmem:[%s195 + $0x10] sm:$0xff]
        %v207 = vld [vmem:[%s195 + $0x18] sm:$0xff]
        %v208 = vld [vmem:[%s195 + $0x20] sm:$0xff]
        %v209 = vld [vmem:[%s195 + $0x28] sm:$0xff]
        %v210 = vld [vmem:[%s195 + $0x30] sm:$0xff]
        %v211 = vld [vmem:[%s195 + $0x38] sm:$0xff]
        %v212 = vld [vmem:[%s195 + $0x40] sm:$0xff]
        %v213 = vld [vmem:[%s195 + $0x48] sm:$0xff]
        %v214 = vld [vmem:[%s195 + $0x50] sm:$0xff]
        %v215 = vld [vmem:[%s195 + $0x58] sm:$0xff]
        %v216 = vld [vmem:[%s195 + $0x60] sm:$0xff]
        %v217 = vld [vmem:[%s195 + $0x68] sm:$0xff]
        %v218 = vld [vmem:[%s195 + $0x70] sm:$0xff]
        %v219 = vld [vmem:[%s195 + $0x78] sm:$0xff]
        %v220 = vld [vmem:[%s1] sm:$0xff]
        %v221 = vld [vmem:[%s1 + $0x8] sm:$0xff]
        %v222 = vld [vmem:[%s1 + $0x10] sm:$0xff]
        %v223 = vld [vmem:[%s1 + $0x18] sm:$0xff]
        %v224 = vld [vmem:[%s1 + $0x20] sm:$0xff]
        %v225 = vld [vmem:[%s1 + $0x28] sm:$0xff]
        %v226 = vld [vmem:[%s1 + $0x30] sm:$0xff]
        %v227 = vld [vmem:[%s1 + $0x38] sm:$0xff]
        %vm228 = vcmask 523264
        %v230 = vsel %vm228, %v204, 0
        %v233 = vsel %vm228, %v205, 0
        %v236 = vsel %vm228, %v206, 0
        %v239 = vsel %vm228, %v207, 0
        %v242 = vsel %vm228, %v208, 0
        %v245 = vsel %vm228, %v209, 0
        %v248 = vsel %vm228, %v210, 0
        %v251 = vsel %vm228, %v211, 0
        %v254 = vsel %vm228, %v212, 0
        %v257 = vsel %vm228, %v213, 0
        %v260 = vsel %vm228, %v214, 0
        %v263 = vsel %vm228, %v215, 0
        %v266 = vsel %vm228, %v216, 0
        %v269 = vsel %vm228, %v217, 0
        %v272 = vsel %vm228, %v218, 0
        %v275 = vsel %vm228, %v219, 0
        %277 = vmatprep.subr.mxu0 0.0
        %278 = vmatpush1.msra.mxu0 0.0
        %279 = vmatprep.subr.mxu0 0.0
        %280 = vmatpush1.msra.mxu0 0.0
        %281 = vmatprep.subr.mxu0 0.0
        %282 = vmatpush1.msra.mxu0 0.0
        %283 = vmatprep.subr.mxu0 0.0
        %284 = vmatpush1.msra.mxu0 0.0
        %285 = vmatprep.subr.mxu0 0.0
        %286 = vmatpush1.msra.mxu0 0.0
        %287 = vmatprep.subr.mxu0 0.0
        %288 = vmatpush1.msra.mxu0 0.0
        %289 = vmatprep.subr.mxu0 0.0
        %290 = vmatpush1.msra.mxu0 0.0
        %291 = vmatprep.subr.mxu0 0.0
        %292 = vmatpush1.msra.mxu0 0.0
        %293 = vmatprep.subr.mxu0 0.0
        %294 = vmatpush1.msra.mxu0 %v227
        %295 = vmatprep.subr.mxu0 0.0
        %296 = vmatpush1.msra.mxu0 %v226
        %297 = vmatprep.subr.mxu0 0.0
        %298 = vmatpush1.msra.mxu0 %v225
        %299 = vmatprep.subr.mxu0 0.0
        %300 = vmatpush1.msra.mxu0 %v224
        %301 = vmatprep.subr.mxu0 0.0
        %302 = vmatpush1.msra.mxu0 %v223
        %303 = vmatprep.subr.mxu0 0.0
        %304 = vmatpush1.msra.mxu0 %v222
        %305 = vmatprep.subr.mxu0 0.0
        %306 = vmatpush1.msra.mxu0 %v221
        %307 = vmatprep.subr.mxu0 0.0
        %308 = vmatpush1.msra.mxu0 %v220
        %309 = vmatprep.subr.mxu0 0.0
        %310 = vmatpush2.msra.mxu0 0.0
        %311 = vmatprep.subr.mxu0 0.0
        %312 = vmatpush2.msra.mxu0 0.0
        %313 = vmatprep.subr.mxu0 0.0
        %314 = vmatpush2.msra.mxu0 0.0
        %315 = vmatprep.subr.mxu0 0.0
        %316 = vmatpush2.msra.mxu0 0.0
        %317 = vmatprep.subr.mxu0 0.0
        %318 = vmatpush2.msra.mxu0 0.0
        %319 = vmatprep.subr.mxu0 0.0
        %320 = vmatpush2.msra.mxu0 0.0
        %321 = vmatprep.subr.mxu0 0.0
        %322 = vmatpush2.msra.mxu0 0.0
        %323 = vmatprep.subr.mxu0 0.0
        %324 = vmatpush2.msra.mxu0 0.0
        %325 = vmatprep.subr.mxu0 0.0
        %326 = vmatpush2.msra.mxu0 0.0
        %327 = vmatprep.subr.mxu0 0.0
        %328 = vmatpush2.msra.mxu0 0.0
        %329 = vmatprep.subr.mxu0 0.0
        %330 = vmatpush2.msra.mxu0 0.0
        %331 = vmatprep.subr.mxu0 0.0
        %332 = vmatpush2.msra.mxu0 0.0
        %333 = vmatprep.subr.mxu0 0.0
        %334 = vmatpush2.msra.mxu0 0.0
        %335 = vmatprep.subr.mxu0 0.0
        %336 = vmatpush2.msra.mxu0 0.0
        %337 = vmatprep.subr.mxu0 0.0
        %338 = vmatpush2.msra.mxu0 0.0
        %339 = vmatprep.subr.mxu0 0.0
        %340 = vmatpush2.msra.mxu0 0.0
        %341 = vmatprep.mubr.f32.mxu0 0.0
        %342 = vmatmul.mubr.f32.gmra.mxu0 %v230
        %v343 = vpop.f32.mrf.mxu0
        %v344 = vadd.f32 0.0, %v343
        %v345 = vpop.f32.mrf.mxu0
        %346 = vmatprep.mubr.f32.mxu0 0.0
        %347 = vmatmul.mubr.f32.gmra.mxu0 %v233
        %v348 = vpop.f32.mrf.mxu0
        %v349 = vadd.f32 0.0, %v348
        %v350 = vpop.f32.mrf.mxu0
        %351 = vmatprep.mubr.f32.mxu0 0.0
        %352 = vmatmul.mubr.f32.gmra.mxu0 %v236
        %v353 = vpop.f32.mrf.mxu0
        %v354 = vadd.f32 0.0, %v353
        %v355 = vpop.f32.mrf.mxu0
        %356 = vmatprep.mubr.f32.mxu0 0.0
        %357 = vmatmul.mubr.f32.gmra.mxu0 %v239
        %v358 = vpop.f32.mrf.mxu0
        %v359 = vadd.f32 0.0, %v358
        %v360 = vpop.f32.mrf.mxu0
        %361 = vmatprep.mubr.f32.mxu0 0.0
        %362 = vmatmul.mubr.f32.gmra.mxu0 %v242
        %v363 = vpop.f32.mrf.mxu0
        %v364 = vadd.f32 0.0, %v363
        %v365 = vpop.f32.mrf.mxu0
        %366 = vmatprep.mubr.f32.mxu0 0.0
        %367 = vmatmul.mubr.f32.gmra.mxu0 %v245
        %v368 = vpop.f32.mrf.mxu0
        %v369 = vadd.f32 0.0, %v368
        %v370 = vpop.f32.mrf.mxu0
        %371 = vmatprep.mubr.f32.mxu0 0.0
        %372 = vmatmul.mubr.f32.gmra.mxu0 %v248
        %v373 = vpop.f32.mrf.mxu0
        %v374 = vadd.f32 0.0, %v373
        %v375 = vpop.f32.mrf.mxu0
        %376 = vmatprep.mubr.f32.mxu0 0.0
        %377 = vmatmul.mubr.f32.gmra.mxu0 %v251
        %v378 = vpop.f32.mrf.mxu0
        %v379 = vadd.f32 0.0, %v378
        %v380 = vpop.f32.mrf.mxu0
        %381 = vmatprep.mubr.f32.mxu0 0.0
        %382 = vmatmul.mubr.f32.gmra.mxu0 %v254
        %v383 = vpop.f32.mrf.mxu0
        %v384 = vadd.f32 0.0, %v383
        %v385 = vpop.f32.mrf.mxu0
        %386 = vmatprep.mubr.f32.mxu0 0.0
        %387 = vmatmul.mubr.f32.gmra.mxu0 %v257
        %v388 = vpop.f32.mrf.mxu0
        %v389 = vadd.f32 0.0, %v388
        %v390 = vpop.f32.mrf.mxu0
        %391 = vmatprep.mubr.f32.mxu0 0.0
        %392 = vmatmul.mubr.f32.gmra.mxu0 %v260
        %v393 = vpop.f32.mrf.mxu0
        %v394 = vadd.f32 0.0, %v393
        %v395 = vpop.f32.mrf.mxu0
        %396 = vmatprep.mubr.f32.mxu0 0.0
        %397 = vmatmul.mubr.f32.gmra.mxu0 %v263
        %v398 = vpop.f32.mrf.mxu0
        %v399 = vadd.f32 0.0, %v398
        %v400 = vpop.f32.mrf.mxu0
        %401 = vmatprep.mubr.f32.mxu0 0.0
        %402 = vmatmul.mubr.f32.gmra.mxu0 %v266
        %v403 = vpop.f32.mrf.mxu0
        %v404 = vadd.f32 0.0, %v403
        %v405 = vpop.f32.mrf.mxu0
        %406 = vmatprep.mubr.f32.mxu0 0.0
        %407 = vmatmul.mubr.f32.gmra.mxu0 %v269
        %v408 = vpop.f32.mrf.mxu0
        %v409 = vadd.f32 0.0, %v408
        %v410 = vpop.f32.mrf.mxu0
        %411 = vmatprep.mubr.f32.mxu0 0.0
        %412 = vmatmul.mubr.f32.gmra.mxu0 %v272
        %v413 = vpop.f32.mrf.mxu0
        %v414 = vadd.f32 0.0, %v413
        %v415 = vpop.f32.mrf.mxu0
        %416 = vmatprep.mubr.f32.mxu0 0.0
        %417 = vmatmul.mubr.f32.gmra.mxu0 %v275
        %v418 = vpop.f32.mrf.mxu0
        %v419 = vadd.f32 0.0, %v418
        %v420 = vpop.f32.mrf.mxu0
        %421 = vdwg.mxu0
        %422 = vst [vmem:[%s188] sm:$0xff] %v344
        %423 = vst [vmem:[%s188 + $0x8] sm:$0xff] %v349
        %424 = vst [vmem:[%s188 + $0x10] sm:$0xff] %v354
        %425 = vst [vmem:[%s188 + $0x18] sm:$0xff] %v359
        %426 = vst [vmem:[%s188 + $0x20] sm:$0xff] %v364
        %427 = vst [vmem:[%s188 + $0x28] sm:$0xff] %v369
        %428 = vst [vmem:[%s188 + $0x30] sm:$0xff] %v374
        %429 = vst [vmem:[%s188 + $0x38] sm:$0xff] %v379
        %430 = vst [vmem:[%s188 + $0x40] sm:$0xff] %v384
        %431 = vst [vmem:[%s188 + $0x48] sm:$0xff] %v389
        %432 = vst [vmem:[%s188 + $0x50] sm:$0xff] %v394
        %433 = vst [vmem:[%s188 + $0x58] sm:$0xff] %v399
        %434 = vst [vmem:[%s188 + $0x60] sm:$0xff] %v404
        %435 = vst [vmem:[%s188 + $0x68] sm:$0xff] %v409
        %436 = vst [vmem:[%s188 + $0x70] sm:$0xff] %v414
        %437 = vst [vmem:[%s188 + $0x78] sm:$0xff] %v419
        %v438 = vld [vmem:[#allocation2] sm:$0x1]
        %v439 = vadd.f32 %v344, %v349
        %v440 = vadd.f32 %v439, %v354
        %v441 = vadd.f32 %v440, %v359
        %v442 = vadd.f32 %v441, %v364
        %v443 = vadd.f32 %v442, %v369
        %v444 = vadd.f32 %v443, %v374
        %v445 = vadd.f32 %v444, %v379
        %v446 = vadd.f32 %v445, %v384
        %v447 = vadd.f32 %v446, %v389
        %v448 = vadd.f32 %v447, %v394
        %v449 = vadd.f32 %v448, %v399
        %v450 = vadd.f32 %v449, %v404
        %v451 = vadd.f32 %v450, %v409
        %v452 = vadd.f32 %v451, %v414
        %v453 = vadd.f32 %v452, %v419
        %v454 = vrot.slane %v453, 4
        %v455 = vadd.f32 %v453, %v454
        %v456 = vrot.slane %v455, 2
        %v457 = vadd.f32 %v455, %v456
        %v458 = vrot.slane %v457, 1
        %v459 = vadd.f32 %v457, %v458
        %v460 = vadd.f32 %v438, %v459
        %461 = vst [vmem:[#allocation2] sm:$0x1] %v460
        %v462 = vld [vmem:[#allocation3] sm:$0x1]
        %v463 = vmul.f32 %v344, %v344
        %v464 = vmul.f32 %v349, %v349
        %v465 = vmul.f32 %v354, %v354
        %v466 = vmul.f32 %v359, %v359
        %v467 = vmul.f32 %v364, %v364
        %v468 = vmul.f32 %v369, %v369
        %v469 = vmul.f32 %v374, %v374
        %v470 = vmul.f32 %v379, %v379
        %v471 = vmul.f32 %v384, %v384
        %v472 = vmul.f32 %v389, %v389
        %v473 = vmul.f32 %v394, %v394
        %v474 = vmul.f32 %v399, %v399
        %v475 = vmul.f32 %v404, %v404
        %v476 = vmul.f32 %v409, %v409
        %v477 = vmul.f32 %v414, %v414
        %v478 = vmul.f32 %v419, %v419
        %v479 = vadd.f32 %v463, %v464
        %v480 = vadd.f32 %v479, %v465
        %v481 = vadd.f32 %v480, %v466
        %v482 = vadd.f32 %v481, %v467
        %v483 = vadd.f32 %v482, %v468
        %v484 = vadd.f32 %v483, %v469
        %v485 = vadd.f32 %v484, %v470
        %v486 = vadd.f32 %v485, %v471
        %v487 = vadd.f32 %v486, %v472
        %v488 = vadd.f32 %v487, %v473
        %v489 = vadd.f32 %v488, %v474
        %v490 = vadd.f32 %v489, %v475
        %v491 = vadd.f32 %v490, %v476
        %v492 = vadd.f32 %v491, %v477
        %v493 = vadd.f32 %v492, %v478
        %v494 = vrot.slane %v493, 4
        %v495 = vadd.f32 %v493, %v494
        %v496 = vrot.slane %v495, 2
        %v497 = vadd.f32 %v495, %v496
        %v498 = vrot.slane %v497, 1
        %v499 = vadd.f32 %v497, %v498
        %v500 = vadd.f32 %v462, %v499
        %501 = vst [vmem:[#allocation3] sm:$0x1] %v500
        %p502 = scmp.eq.s32.totalorder %s20, 1
        // Predicated region
        $region37: #{tpu_custom_call.1} parent=31 // pred_check
          %p503 = pneg %p502
        $region38: #{tpu_custom_call.1} parent=31 // pred_check_branch
          %505 = sbr.rel (%p503) target = $region40
        $region39: #{tpu_custom_call.1} parent=31 // pred_region
          %v506 = vld [vmem:[#allocation2] sm:$0x1]
          %v507 = vmul.f32 %v506, 0.00390625
          %v508 = vld [vmem:[#allocation3] sm:$0x1]
          %v509 = vmul.f32 %v508, 0.00390625
          %v510 = vmul.f32 %v507, %v507
          %v511 = vsub.f32 %v509, %v510
          %v512 = vadd.f32 %v511, 1e-05
          %v513 = vrsqrt.pop %v512
          %v514 = vld [vmem:[%s2] sm:$0x3]
          %v515 = vmul.f32 %v514, %v513
          %v516 = vmul.f32 %v507, %v515
          %v518 = vlaneseq
          %v519 = vshrl.u32 %v518, 7
          %v520 = vsub.s32 0, %v519
          %v521 = vrot.slane %v516, %v520
          %v523 = vsub.f32 %v514, %v521
          %vm524 = vcmask 1040384
          %v525 = vsel %vm524, %v515, %v523
          %526 = vst [vmem:[#allocation6] sm:$0x3] %v525
        $region40: #{tpu_custom_call.1} parent=31 // pred_fallthru
          _
        %s527 = sand.u32 %s96, 1
        %s528 = scalar_lea.sflag [#allocation5], %s527
        %s529 = sand.u32 %s96, 1
        %s530 = smul.addr %s529, 128
        %s531 = scalar_lea.vmem [#allocation4], %s530
        // Predicated region
        $region41: #{tpu_custom_call.1} parent=31 // pred_check
          %p532 = pneg %p106
        $region42: #{tpu_custom_call.1} parent=31 // pred_check_branch
          %534 = sbr.rel (%p532) target = $region44
        $region43: #{tpu_custom_call.1} parent=31 // pred_region
          %s535 = smul.u32 16, %s20
          %s537 = ssub.s32 2048, 2048
          %538 = vsyncadd %s528, %s537
          %s539 = smul.addr %s535, 128
          %s540 = scalar_lea.hbm %s3, %s539
          %s541 = sshll.u32 %s531, 4
          %s542 = int_to_ptr.vmem [resolvable:$true] %s541
          %547 = dma.vmem_to_hbm [thread:$0]  %s542, 2048, %s540, %s528, 128, 128, 8
        $region44: #{tpu_custom_call.1} parent=31 // pred_fallthru
          _
        // Predicated region
        $region45: #{tpu_custom_call.1} parent=31 // pred_check
          %p548 = pneg %p127
        $region46: #{tpu_custom_call.1} parent=31 // pred_check_branch
          %550 = sbr.rel (%p548) target = $region48
        $region47: #{tpu_custom_call.1} parent=31 // pred_region
          %s552 = ssub.s32 32, 32
          %553 = vsyncadd [#allocation7], %s552
          %s555 = sshll.u32 [#allocation6], 4
          %s556 = int_to_ptr.vmem [resolvable:$true] %s555
          %558 = dma.vmem_to_hbm [thread:$0]  %s556, 32, %s4, [#allocation7]
        $region48: #{tpu_custom_call.1} parent=31 // pred_fallthru
          _
        // Predicated region
        $region49: #{tpu_custom_call.1} parent=31 // pred_check
          %p559 = pneg %p127
        $region50: #{tpu_custom_call.1} parent=31 // pred_check_branch
          %561 = sbr.rel (%p559) target = $region52
        $region51: #{tpu_custom_call.1} parent=31 // pred_region
          %562 = dma.done [#allocation7], 32
        $region52: #{tpu_custom_call.1} parent=31 // pred_fallthru
          _
      $region32: #{tpu_custom_call.1} parent=5 // pred_fallthru
        _
      %p563 = scmp.le.s32.totalorder 2, %s15
      // Predicated region
      $region53: #{tpu_custom_call.1} parent=5 // pred_check
        %p564 = pneg %p563
      $region54: #{tpu_custom_call.1} parent=5 // pred_check_branch
        %566 = sbr.rel (%p564) target = $region56
      $region55: #{tpu_custom_call.1} parent=5 // pred_region
        %s567 = ssub.s32 %s15, 2
        // Predicated region
        $region57: #{tpu_custom_call.1} parent=55 // pred_check
          %p568 = pneg %p112
        $region58: #{tpu_custom_call.1} parent=55 // pred_check_branch
          %570 = sbr.rel (%p568) target = $region60
        $region59: #{tpu_custom_call.1} parent=55 // pred_region
          %s571 = sand.u32 %s97, 1
          %s572 = scalar_lea.sflag [#allocation5], %s571
          %s573 = sand.u32 %s97, 1
          %s574 = smul.addr %s573, 128
          %s575 = scalar_lea.vmem [#allocation4], %s574
          %576 = dma.done %s572, 2048
        $region60: #{tpu_custom_call.1} parent=55 // pred_fallthru
          _
      $region56: #{tpu_custom_call.1} parent=5 // pred_fallthru
        _
    $region6: #{tpu_custom_call.1} parent=1 // loop_footer
      %s19 = sadd.s32 1, %s15
    $region7: #{tpu_custom_call.1} parent=1 // loop_footer_branch
      %14 = sbr.rel target = $region3
    $region8: #{tpu_custom_call.1} parent=1 // loop_exit
      _
    %577 = vsyncpa [#allocation5], 1
    %s578 = scalar_lea.sflag [#allocation5], 1
    %579 = vsyncpa %s578, 1
    %580 = vsyncpa [#allocation7], 1

</llo_original>
